<compile_context>
chip_gen: v5e
topology: v5e:2x2
jax: 0.10.0
libtpu: 0.0.40
codegen_flags: <defaults>
</compile_context>

<pallas_src>
import functools

import jax
import jax.numpy as jnp
from jax.experimental import pallas as pl
from jax.experimental.pallas import tpu as pltpu


def rnn_chunk_kernel(x_ref, h0_ref, wh_ref, uh_ref, bh_ref, by_ref,
                     y_ref, hT_ref,
                     h_carry, xwh_ref,
                     *, stats_rows, emit_stats):
    """One grid step == (one batch block) x (one chunk of TT timesteps).

    Refs (BB = batch-block rows, TT = timesteps per chunk):
      x_ref   : (TT*BB, D)  chunk of this batch block's input (compute dtype)
      h0_ref  : (BB, H)     initial hidden state for this batch block (f32)
      wh_ref  : (D, H)      W_h (compute dtype)
      uh_ref  : (H, H)      U_h (compute dtype)
      bh_ref  : (1, H)      b_h (f32)
      by_ref  : (1, H)      b_y (f32)
      y_ref   : (TT*BB, H)  stacked outputs for this chunk (y dtype)
      hT_ref  : (BB, H)     final hidden state (f32, rewritten every chunk)
      h_carry : (BB, H)     persistent hidden-state carry across chunks (f32)
      xwh_ref : (TT*BB, H)  precomputed input projection for this chunk (f32)
    """
    c = pl.program_id(1)                       # time-chunk index (sequential)
    TTB, H = xwh_ref.shape
    BB = h_carry.shape[0]
    TT = TTB // BB
    cdt = wh_ref.dtype                         # MXU input dtype (f32 or bf16)
    y_is_bf16 = jnp.dtype(y_ref.dtype) == jnp.dtype(jnp.bfloat16)

    @pl.when(c == 0)
    def _():
        h_carry[...] = h0_ref[...]

    # ---- Hoisted input projection: one batched MXU matmul per chunk -------
    xwh_ref[...] = (
        jnp.dot(x_ref[...], wh_ref[...], preferred_element_type=jnp.float32)
        + bh_ref[...])                         # (1,H) bias broadcast, once

    uh = uh_ref[...]                           # keep weights resident as values
    wh = wh_ref[...]
    by = by_ref[...]

    # ---- Serial recurrence; per-step y projection interleaved -------------
    def step(t, h):
        row = pl.multiple_of(t * BB, BB)       # BB % 8 == 0 -> tile-aligned
        pre = xwh_ref[pl.ds(row, BB), :] + jnp.dot(
            h, uh, preferred_element_type=jnp.float32)
        h_new = jnp.tanh(pre).astype(cdt)      # loop-carried h in compute dtype

        # Output projection for step t: independent of the recurrence chain,
        # so (with unrolling) it hides under step t+1's h @ U_h latency.
        y_pre = jnp.dot(h_new, wh, preferred_element_type=jnp.float32) + by
        if y_is_bf16:
            y_t = jnp.tanh(y_pre.astype(jnp.bfloat16))   # bf16 EUP (v6e/v7x)
        else:
            y_t = jnp.tanh(y_pre).astype(y_ref.dtype)
        y_ref[pl.ds(row, BB), :] = y_t

        if emit_stats:
            @pl.when(((c * TT + t) % 10) == 0)
            def _():
                hr = h_new[:stats_rows, :].astype(jnp.float32)
                mean = jnp.mean(hr)
                var = jnp.sum((hr - mean) ** 2) / (hr.size - 1)  # unbiased
                pl.debug_print("stats:  {} {}", mean, var)
        return h_new

    h_last = jax.lax.fori_loop(0, TT, step, h_carry[...].astype(cdt),
                               unroll=(True if TT <= 8 else 8))

    h_last_f32 = h_last.astype(jnp.float32)
    h_carry[...] = h_last_f32
    hT_ref[...] = h_last_f32                   # written every chunk (cheap)


def rnn_forward(x, h0, W_h, U_h, b_h, b_y, *, chunk=None, batch_blocks=None,
                compute_dtype=jnp.float32, y_dtype=jnp.float32,
                vmem_budget_bytes=8 * 1024 * 1024, emit_stats=False):
    """x: (T, B, D) time-major, h0: (B, H). Returns (y: (T, B, H), hT: (B, H))."""
    T, B, D = x.shape
    H = U_h.shape[0]
    assert D == H, "literal forward uses h @ W_h for the output, so D must == H"

    x_bytes = jnp.dtype(compute_dtype).itemsize
    y_bytes = jnp.dtype(y_dtype).itemsize

    # ---- batch padding / batch blocks (sublane alignment + megacore) ------
    Bp = ((B + 7) // 8) * 8                    # pad batch to sublane tile
    if batch_blocks is None:
        batch_blocks = 2 if (Bp >= 16 and Bp % 16 == 0) else 1
    n_bb = batch_blocks
    assert Bp % n_bb == 0 and (Bp // n_bb) % 8 == 0
    BB = Bp // n_bb

    # ---- chunk from an explicit VMEM budget (v5e 16 MiB / v7x 32 MiB) -----
    if chunk is None:
        per_step_row = BB * (2 * D * x_bytes      # x block, double-buffered
                             + 2 * H * y_bytes    # y block, double-buffered
                             + H * 4)             # xwh scratch (f32)
        max_chunk = max(1, vmem_budget_bytes // per_step_row)
        chunk = 1
        for d_ in range(1, T + 1):
            if T % d_ == 0 and d_ <= max_chunk:
                chunk = d_
    assert T % chunk == 0, "T must be divisible by the time chunk"
    n_chunks = T // chunk

    # ---- host-side layout: (T, B, D) -> batch-block-major (n_bb*T*BB, D) --
    x_p = x if Bp == B else jnp.pad(x, ((0, 0), (0, Bp - B), (0, 0)))
    x_p = (x_p.reshape(T, n_bb, BB, D).transpose(1, 0, 2, 3)
           .reshape(n_bb * T * BB, D).astype(compute_dtype))
    h0_p = (h0 if Bp == B else jnp.pad(h0, ((0, Bp - B), (0, 0)))
            ).astype(jnp.float32)                       # (n_bb*BB, H)

    wh = W_h.astype(compute_dtype)
    uh = U_h.astype(compute_dtype)
    bh = b_h.reshape(1, H).astype(jnp.float32)
    by = b_y.reshape(1, H).astype(jnp.float32)

    # ---- VMEM estimate -> vmem_limit_bytes ---------------------------------
    est = ((D * H + H * H) * x_bytes + 4 * H * 4
           + 2 * chunk * BB * D * x_bytes
           + 2 * chunk * BB * H * y_bytes
           + chunk * BB * H * 4
           + 3 * BB * H * 4)
    vmem_limit = int(min(48 * 1024 * 1024, max(16 * 1024 * 1024, 2 * est)))

    kernel = functools.partial(rnn_chunk_kernel,
                               stats_rows=min(B, BB), emit_stats=emit_stats)

    grid_spec = pltpu.PrefetchScalarGridSpec(
        num_scalar_prefetch=0,
        grid=(n_bb, n_chunks),                 # (batch-parallel, time-serial)
        in_specs=[
            pl.BlockSpec((chunk * BB, D), lambda b, c: (b * n_chunks + c, 0)),
            pl.BlockSpec((BB, H),         lambda b, c: (b, 0)),   # h0 block
            pl.BlockSpec((D, H),          lambda b, c: (0, 0)),   # W_h resident
            pl.BlockSpec((H, H),          lambda b, c: (0, 0)),   # U_h resident
            pl.BlockSpec((1, H),          lambda b, c: (0, 0)),   # b_h
            pl.BlockSpec((1, H),          lambda b, c: (0, 0)),   # b_y
        ],
        out_specs=[
            pl.BlockSpec((chunk * BB, H), lambda b, c: (b * n_chunks + c, 0)),
            pl.BlockSpec((BB, H),         lambda b, c: (b, 0)),   # final h
        ],
        scratch_shapes=[
            pltpu.VMEM((BB, H), jnp.float32),           # hidden-state carry
            pltpu.VMEM((chunk * BB, H), jnp.float32),   # input projection slab
        ],
    )

    y_flat, hT_p = pl.pallas_call(
        kernel,
        out_shape=(jax.ShapeDtypeStruct((n_bb * T * BB, H), y_dtype),
                   jax.ShapeDtypeStruct((n_bb * BB, H), jnp.float32)),
        grid_spec=grid_spec,
        compiler_params=pltpu.CompilerParams(
            dimension_semantics=("parallel", "arbitrary"),
            vmem_limit_bytes=vmem_limit),
    )(x_p, h0_p, wh, uh, bh, by)

    y = (y_flat.reshape(n_bb, T, BB, H).transpose(1, 0, 2, 3)
         .reshape(T, Bp, H)[:, :B, :])
    hT = hT_p[:B, :]
    return y, hT


def rnn_reference(x, h0, W_h, U_h, b_h, b_y):
    """Pure-JAX reference of the (literal) PyTorch forward, for validation."""
    def step(h, x_t):
        h = jnp.tanh(x_t @ W_h + h @ U_h + b_h)
        y_t = jnp.tanh(h @ W_h + b_y)
        return h, y_t
    hT, y = jax.lax.scan(step, h0, x)
    return y, hT


if __name__ == "__main__":
    T, B, D, H = 8, 2, 32, 32    # seq=8, batch=2, input=hidden=32
    O = 16                       # W_y output dim (parameter unused by forward)

    key = jax.random.PRNGKey(0)
    kx, kh, k1, k2, k3, k4, k5, kx2, kh2 = jax.random.split(key, 9)

    x = jax.random.normal(kx, (T, B, D), dtype=jnp.float32)
    h0 = jax.random.normal(kh, (B, H), dtype=jnp.float32)
    W_h = jax.random.normal(k1, (D, H), dtype=jnp.float32) * 0.1
    U_h = jax.random.normal(k2, (H, H), dtype=jnp.float32) * 0.1
    W_y = jax.random.normal(k3, (H, O), dtype=jnp.float32) * 0.1  # unused, as in reference
    b_h = jax.random.normal(k4, (H,), dtype=jnp.float32) * 0.1
    b_y = jax.random.normal(k5, (H,), dtype=jnp.float32) * 0.1

    y_ref, hT_ref = rnn_reference(x, h0, W_h, U_h, b_h, b_y)

    # 1) f32 path, auto chunk (single chunk), single batch block
    y, hT = rnn_forward(x, h0, W_h, U_h, b_h, b_y)
    jax.block_until_ready((y, hT))
    assert y.shape == (T, B, H) and hT.shape == (B, H)
    assert jnp.allclose(y, y_ref, atol=2e-5), "y mismatch vs reference (f32)"
    assert jnp.allclose(hT, hT_ref, atol=2e-5), "h mismatch vs reference (f32)"

    # 2) f32 path, multi-chunk grid (exercises the hidden-state carry)
    y_c, hT_c = rnn_forward(x, h0, W_h, U_h, b_h, b_y, chunk=4)
    jax.block_until_ready((y_c, hT_c))
    assert jnp.allclose(y_c, y_ref, atol=2e-5), "y mismatch (chunked)"
    assert jnp.allclose(hT_c, hT_ref, atol=2e-5), "h mismatch (chunked)"

    # 3) bf16 MXU inputs + bf16 in-loop h, f32 accumulation/carry
    y_b, hT_b = rnn_forward(x, h0, W_h, U_h, b_h, b_y,
                            compute_dtype=jnp.bfloat16)
    jax.block_until_ready((y_b, hT_b))
    assert jnp.allclose(y_b, y_ref, atol=5e-2), "y mismatch (bf16 compute)"
    assert jnp.allclose(hT_b, hT_ref, atol=5e-2), "h mismatch (bf16 compute)"

    # 4) bf16 y output (bf16 output tanh + halved y writeback; v6e/v7x)
    y_o, hT_o = rnn_forward(x, h0, W_h, U_h, b_h, b_y, y_dtype=jnp.bfloat16)
    jax.block_until_ready((y_o, hT_o))
    assert jnp.allclose(y_o.astype(jnp.float32), y_ref, atol=3e-2), \
        "y mismatch (bf16 output)"
    assert jnp.allclose(hT_o, hT_ref, atol=2e-5), "h mismatch (bf16 output)"

    # 5) larger batch -> 2 batch blocks on the "parallel" grid axis + chunking
    B2 = 16
    x2 = jax.random.normal(kx2, (T, B2, D), dtype=jnp.float32)
    h02 = jax.random.normal(kh2, (B2, H), dtype=jnp.float32)
    y2_ref, hT2_ref = rnn_reference(x2, h02, W_h, U_h, b_h, b_y)
    y2, hT2 = rnn_forward(x2, h02, W_h, U_h, b_h, b_y, chunk=4)
    jax.block_until_ready((y2, hT2))
    assert jnp.allclose(y2, y2_ref, atol=2e-5), "y mismatch (batch blocks)"
    assert jnp.allclose(hT2, hT2_ref, atol=2e-5), "h mismatch (batch blocks)"

    print("KERNEL_OK")
</pallas_src>

<mosaic_0001>
module attributes {stable_mosaic.version = 11 : i64} {
  func.func @rnn_chunk_kernel(%arg0: i32, %arg1: i32, %arg2: memref<64x32xf32, #tpu.memory_space<vmem>>, %arg3: memref<8x32xf32, #tpu.memory_space<vmem>>, %arg4: memref<32x32xf32, #tpu.memory_space<vmem>>, %arg5: memref<32x32xf32, #tpu.memory_space<vmem>>, %arg6: memref<1x32xf32, #tpu.memory_space<vmem>>, %arg7: memref<1x32xf32, #tpu.memory_space<vmem>>, %arg8: memref<64x32xf32, #tpu.memory_space<vmem>>, %arg9: memref<8x32xf32, #tpu.memory_space<vmem>>, %arg10: memref<8x32xf32, #tpu.memory_space<vmem>>, %arg11: memref<64x32xf32, #tpu.memory_space<vmem>>) attributes {dimension_semantics = [#tpu.dimension_semantics<parallel>, #tpu.dimension_semantics<arbitrary>], iteration_bounds = array<i64: 1, 1>, scalar_prefetch = 0 : i64, scratch_operands = 2 : i64, tpu.core_type = #tpu.core_type<tc>, window_params = [{transform_indices = @transform_0, window_bounds = array<i64: 64, 32>}, {transform_indices = @transform_1, window_bounds = array<i64: 8, 32>}, {pipeline_mode = #tpu.pipeline_mode<synchronous>, transform_indices = @transform_2, window_bounds = array<i64: 32, 32>}, {pipeline_mode = #tpu.pipeline_mode<synchronous>, transform_indices = @transform_3, window_bounds = array<i64: 32, 32>}, {pipeline_mode = #tpu.pipeline_mode<synchronous>, transform_indices = @transform_4, window_bounds = array<i64: 1, 32>}, {pipeline_mode = #tpu.pipeline_mode<synchronous>, transform_indices = @transform_5, window_bounds = array<i64: 1, 32>}, {transform_indices = @transform_6, window_bounds = array<i64: 64, 32>}, {transform_indices = @transform_7, window_bounds = array<i64: 8, 32>}]} {
    %c0_i32 = arith.constant 0 : i32
    %0 = arith.cmpi eq, %arg1, %c0_i32 : i32
    %1 = arith.extui %0 : i1 to i32
    %c0_i32_0 = arith.constant 0 : i32
    %2 = arith.cmpi ne, %1, %c0_i32_0 : i32
    scf.if %2 {
      %c0_61 = arith.constant 0 : index
      %c0_62 = arith.constant 0 : index
      %120 = vector.load %arg3[%c0_61, %c0_62] : memref<8x32xf32, #tpu.memory_space<vmem>>, vector<8x32xf32>
      %c0_63 = arith.constant 0 : index
      %c0_64 = arith.constant 0 : index
      %121 = vector.load %arg10[%c0_63, %c0_64] : memref<8x32xf32, #tpu.memory_space<vmem>>, vector<8x32xf32>
      tpu.vector_store %arg10[%c0_63, %c0_64], %120 {strides = array<i32>} : memref<8x32xf32, #tpu.memory_space<vmem>>, vector<8x32xf32>,
    } else {
    }
    %c0 = arith.constant 0 : index
    %c0_1 = arith.constant 0 : index
    %3 = vector.load %arg2[%c0, %c0_1] : memref<64x32xf32, #tpu.memory_space<vmem>>, vector<64x32xf32>
    %c0_2 = arith.constant 0 : index
    %c0_3 = arith.constant 0 : index
    %4 = vector.load %arg4[%c0_2, %c0_3] : memref<32x32xf32, #tpu.memory_space<vmem>>, vector<32x32xf32>
    %cst = arith.constant dense<0.000000e+00> : vector<64x32xf32>
    %5 = tpu.matmul %3, %4, %cst {dimension_numbers = #tpu.dot_dimension_numbers<[1], [0], [0], [1], [0, 0, 1, 1], [], []>} : vector<64x32xf32>, vector<32x32xf32>, vector<64x32xf32> -> vector<64x32xf32>
    %c0_4 = arith.constant 0 : index
    %c0_5 = arith.constant 0 : index
    %6 = vector.load %arg6[%c0_4, %c0_5] : memref<1x32xf32, #tpu.memory_space<vmem>>, vector<1x32xf32>
    %7 = vector.broadcast %6 : vector<1x32xf32> to vector<64x32xf32>
    %8 = arith.addf %5, %7 : vector<64x32xf32>
    %c0_6 = arith.constant 0 : index
    %c0_7 = arith.constant 0 : index
    %9 = vector.load %arg11[%c0_6, %c0_7] : memref<64x32xf32, #tpu.memory_space<vmem>>, vector<64x32xf32>
    tpu.vector_store %arg11[%c0_6, %c0_7], %8 {strides = array<i32>} : memref<64x32xf32, #tpu.memory_space<vmem>>, vector<64x32xf32>,
    %c0_8 = arith.constant 0 : index
    %c0_9 = arith.constant 0 : index
    %10 = vector.load %arg5[%c0_8, %c0_9] : memref<32x32xf32, #tpu.memory_space<vmem>>, vector<32x32xf32>
    %c0_10 = arith.constant 0 : index
    %c0_11 = arith.constant 0 : index
    %11 = vector.load %arg4[%c0_10, %c0_11] : memref<32x32xf32, #tpu.memory_space<vmem>>, vector<32x32xf32>
    %c0_12 = arith.constant 0 : index
    %c0_13 = arith.constant 0 : index
    %12 = vector.load %arg7[%c0_12, %c0_13] : memref<1x32xf32, #tpu.memory_space<vmem>>, vector<1x32xf32>
    %c0_14 = arith.constant 0 : index
    %c0_15 = arith.constant 0 : index
    %13 = vector.load %arg10[%c0_14, %c0_15] : memref<8x32xf32, #tpu.memory_space<vmem>>, vector<8x32xf32>
    %c0_i32_16 = arith.constant 0 : i32
    %c8_i32 = arith.constant 8 : i32
    %14 = arith.muli %c0_i32_16, %c8_i32 : i32
    %15 = tpu.assume_multiple %14, 8 : i32
    %16 = arith.index_cast %15 : i32 to index
    %c0_17 = arith.constant 0 : index
    %17 = vector.load %arg11[%16, %c0_17] : memref<64x32xf32, #tpu.memory_space<vmem>>, vector<8x32xf32>
    %cst_18 = arith.constant dense<0.000000e+00> : vector<8x32xf32>
    %18 = tpu.matmul %13, %10, %cst_18 {dimension_numbers = #tpu.dot_dimension_numbers<[1], [0], [0], [1], [0, 0, 1, 1], [], []>} : vector<8x32xf32>, vector<32x32xf32>, vector<8x32xf32> -> vector<8x32xf32>
    %19 = arith.addf %17, %18 : vector<8x32xf32>
    %20 = math.tanh %19 : vector<8x32xf32>
    %cst_19 = arith.constant dense<0.000000e+00> : vector<8x32xf32>
    %21 = tpu.matmul %20, %11, %cst_19 {dimension_numbers = #tpu.dot_dimension_numbers<[1], [0], [0], [1], [0, 0, 1, 1], [], []>} : vector<8x32xf32>, vector<32x32xf32>, vector<8x32xf32> -> vector<8x32xf32>
    %22 = vector.broadcast %12 : vector<1x32xf32> to vector<8x32xf32>
    %23 = arith.addf %21, %22 : vector<8x32xf32>
    %24 = math.tanh %23 : vector<8x32xf32>
    %25 = arith.index_cast %15 : i32 to index
    %c0_20 = arith.constant 0 : index
    %26 = vector.load %arg8[%25, %c0_20] : memref<64x32xf32, #tpu.memory_space<vmem>>, vector<8x32xf32>
    tpu.vector_store %arg8[%25, %c0_20], %24 {strides = array<i32>} : memref<64x32xf32, #tpu.memory_space<vmem>>, vector<8x32xf32>,
    %c1_i32 = arith.constant 1 : i32
    %c8_i32_21 = arith.constant 8 : i32
    %27 = arith.muli %c1_i32, %c8_i32_21 : i32
    %28 = tpu.assume_multiple %27, 8 : i32
    %29 = arith.index_cast %28 : i32 to index
    %c0_22 = arith.constant 0 : index
    %30 = vector.load %arg11[%29, %c0_22] : memref<64x32xf32, #tpu.memory_space<vmem>>, vector<8x32xf32>
    %cst_23 = arith.constant dense<0.000000e+00> : vector<8x32xf32>
    %31 = tpu.matmul %20, %10, %cst_23 {dimension_numbers = #tpu.dot_dimension_numbers<[1], [0], [0], [1], [0, 0, 1, 1], [], []>} : vector<8x32xf32>, vector<32x32xf32>, vector<8x32xf32> -> vector<8x32xf32>
    %32 = arith.addf %30, %31 : vector<8x32xf32>
    %33 = math.tanh %32 : vector<8x32xf32>
    %cst_24 = arith.constant dense<0.000000e+00> : vector<8x32xf32>
    %34 = tpu.matmul %33, %11, %cst_24 {dimension_numbers = #tpu.dot_dimension_numbers<[1], [0], [0], [1], [0, 0, 1, 1], [], []>} : vector<8x32xf32>, vector<32x32xf32>, vector<8x32xf32> -> vector<8x32xf32>
    %35 = vector.broadcast %12 : vector<1x32xf32> to vector<8x32xf32>
    %36 = arith.addf %34, %35 : vector<8x32xf32>
    %37 = math.tanh %36 : vector<8x32xf32>
    %38 = arith.index_cast %28 : i32 to index
    %c0_25 = arith.constant 0 : index
    %39 = vector.load %arg8[%38, %c0_25] : memref<64x32xf32, #tpu.memory_space<vmem>>, vector<8x32xf32>
    tpu.vector_store %arg8[%38, %c0_25], %37 {strides = array<i32>} : memref<64x32xf32, #tpu.memory_space<vmem>>, vector<8x32xf32>,
    %c2_i32 = arith.constant 2 : i32
    %c8_i32_26 = arith.constant 8 : i32
    %40 = arith.muli %c2_i32, %c8_i32_26 : i32
    %41 = tpu.assume_multiple %40, 8 : i32
    %42 = arith.index_cast %41 : i32 to index
    %c0_27 = arith.constant 0 : index
    %43 = vector.load %arg11[%42, %c0_27] : memref<64x32xf32, #tpu.memory_space<vmem>>, vector<8x32xf32>
    %cst_28 = arith.constant dense<0.000000e+00> : vector<8x32xf32>
    %44 = tpu.matmul %33, %10, %cst_28 {dimension_numbers = #tpu.dot_dimension_numbers<[1], [0], [0], [1], [0, 0, 1, 1], [], []>} : vector<8x32xf32>, vector<32x32xf32>, vector<8x32xf32> -> vector<8x32xf32>
    %45 = arith.addf %43, %44 : vector<8x32xf32>
    %46 = math.tanh %45 : vector<8x32xf32>
    %cst_29 = arith.constant dense<0.000000e+00> : vector<8x32xf32>
    %47 = tpu.matmul %46, %11, %cst_29 {dimension_numbers = #tpu.dot_dimension_numbers<[1], [0], [0], [1], [0, 0, 1, 1], [], []>} : vector<8x32xf32>, vector<32x32xf32>, vector<8x32xf32> -> vector<8x32xf32>
    %48 = vector.broadcast %12 : vector<1x32xf32> to vector<8x32xf32>
    %49 = arith.addf %47, %48 : vector<8x32xf32>
    %50 = math.tanh %49 : vector<8x32xf32>
    %51 = arith.index_cast %41 : i32 to index
    %c0_30 = arith.constant 0 : index
    %52 = vector.load %arg8[%51, %c0_30] : memref<64x32xf32, #tpu.memory_space<vmem>>, vector<8x32xf32>
    tpu.vector_store %arg8[%51, %c0_30], %50 {strides = array<i32>} : memref<64x32xf32, #tpu.memory_space<vmem>>, vector<8x32xf32>,
    %c3_i32 = arith.constant 3 : i32
    %c8_i32_31 = arith.constant 8 : i32
    %53 = arith.muli %c3_i32, %c8_i32_31 : i32
    %54 = tpu.assume_multiple %53, 8 : i32
    %55 = arith.index_cast %54 : i32 to index
    %c0_32 = arith.constant 0 : index
    %56 = vector.load %arg11[%55, %c0_32] : memref<64x32xf32, #tpu.memory_space<vmem>>, vector<8x32xf32>
    %cst_33 = arith.constant dense<0.000000e+00> : vector<8x32xf32>
    %57 = tpu.matmul %46, %10, %cst_33 {dimension_numbers = #tpu.dot_dimension_numbers<[1], [0], [0], [1], [0, 0, 1, 1], [], []>} : vector<8x32xf32>, vector<32x32xf32>, vector<8x32xf32> -> vector<8x32xf32>
    %58 = arith.addf %56, %57 : vector<8x32xf32>
    %59 = math.tanh %58 : vector<8x32xf32>
    %cst_34 = arith.constant dense<0.000000e+00> : vector<8x32xf32>
    %60 = tpu.matmul %59, %11, %cst_34 {dimension_numbers = #tpu.dot_dimension_numbers<[1], [0], [0], [1], [0, 0, 1, 1], [], []>} : vector<8x32xf32>, vector<32x32xf32>, vector<8x32xf32> -> vector<8x32xf32>
    %61 = vector.broadcast %12 : vector<1x32xf32> to vector<8x32xf32>
    %62 = arith.addf %60, %61 : vector<8x32xf32>
    %63 = math.tanh %62 : vector<8x32xf32>
    %64 = arith.index_cast %54 : i32 to index
    %c0_35 = arith.constant 0 : index
    %65 = vector.load %arg8[%64, %c0_35] : memref<64x32xf32, #tpu.memory_space<vmem>>, vector<8x32xf32>
    tpu.vector_store %arg8[%64, %c0_35], %63 {strides = array<i32>} : memref<64x32xf32, #tpu.memory_space<vmem>>, vector<8x32xf32>,
    %c4_i32 = arith.constant 4 : i32
    %c8_i32_36 = arith.constant 8 : i32
    %66 = arith.muli %c4_i32, %c8_i32_36 : i32
    %67 = tpu.assume_multiple %66, 8 : i32
    %68 = arith.index_cast %67 : i32 to index
    %c0_37 = arith.constant 0 : index
    %69 = vector.load %arg11[%68, %c0_37] : memref<64x32xf32, #tpu.memory_space<vmem>>, vector<8x32xf32>
    %cst_38 = arith.constant dense<0.000000e+00> : vector<8x32xf32>
    %70 = tpu.matmul %59, %10, %cst_38 {dimension_numbers = #tpu.dot_dimension_numbers<[1], [0], [0], [1], [0, 0, 1, 1], [], []>} : vector<8x32xf32>, vector<32x32xf32>, vector<8x32xf32> -> vector<8x32xf32>
    %71 = arith.addf %69, %70 : vector<8x32xf32>
    %72 = math.tanh %71 : vector<8x32xf32>
    %cst_39 = arith.constant dense<0.000000e+00> : vector<8x32xf32>
    %73 = tpu.matmul %72, %11, %cst_39 {dimension_numbers = #tpu.dot_dimension_numbers<[1], [0], [0], [1], [0, 0, 1, 1], [], []>} : vector<8x32xf32>, vector<32x32xf32>, vector<8x32xf32> -> vector<8x32xf32>
    %74 = vector.broadcast %12 : vector<1x32xf32> to vector<8x32xf32>
    %75 = arith.addf %73, %74 : vector<8x32xf32>
    %76 = math.tanh %75 : vector<8x32xf32>
    %77 = arith.index_cast %67 : i32 to index
    %c0_40 = arith.constant 0 : index
    %78 = vector.load %arg8[%77, %c0_40] : memref<64x32xf32, #tpu.memory_space<vmem>>, vector<8x32xf32>
    tpu.vector_store %arg8[%77, %c0_40], %76 {strides = array<i32>} : memref<64x32xf32, #tpu.memory_space<vmem>>, vector<8x32xf32>,
    %c5_i32 = arith.constant 5 : i32
    %c8_i32_41 = arith.constant 8 : i32
    %79 = arith.muli %c5_i32, %c8_i32_41 : i32
    %80 = tpu.assume_multiple %79, 8 : i32
    %81 = arith.index_cast %80 : i32 to index
    %c0_42 = arith.constant 0 : index
    %82 = vector.load %arg11[%81, %c0_42] : memref<64x32xf32, #tpu.memory_space<vmem>>, vector<8x32xf32>
    %cst_43 = arith.constant dense<0.000000e+00> : vector<8x32xf32>
    %83 = tpu.matmul %72, %10, %cst_43 {dimension_numbers = #tpu.dot_dimension_numbers<[1], [0], [0], [1], [0, 0, 1, 1], [], []>} : vector<8x32xf32>, vector<32x32xf32>, vector<8x32xf32> -> vector<8x32xf32>
    %84 = arith.addf %82, %83 : vector<8x32xf32>
    %85 = math.tanh %84 : vector<8x32xf32>
    %cst_44 = arith.constant dense<0.000000e+00> : vector<8x32xf32>
    %86 = tpu.matmul %85, %11, %cst_44 {dimension_numbers = #tpu.dot_dimension_numbers<[1], [0], [0], [1], [0, 0, 1, 1], [], []>} : vector<8x32xf32>, vector<32x32xf32>, vector<8x32xf32> -> vector<8x32xf32>
    %87 = vector.broadcast %12 : vector<1x32xf32> to vector<8x32xf32>
    %88 = arith.addf %86, %87 : vector<8x32xf32>
    %89 = math.tanh %88 : vector<8x32xf32>
    %90 = arith.index_cast %80 : i32 to index
    %c0_45 = arith.constant 0 : index
    %91 = vector.load %arg8[%90, %c0_45] : memref<64x32xf32, #tpu.memory_space<vmem>>, vector<8x32xf32>
    tpu.vector_store %arg8[%90, %c0_45], %89 {strides = array<i32>} : memref<64x32xf32, #tpu.memory_space<vmem>>, vector<8x32xf32>,
    %c6_i32 = arith.constant 6 : i32
    %c8_i32_46 = arith.constant 8 : i32
    %92 = arith.muli %c6_i32, %c8_i32_46 : i32
    %93 = tpu.assume_multiple %92, 8 : i32
    %94 = arith.index_cast %93 : i32 to index
    %c0_47 = arith.constant 0 : index
    %95 = vector.load %arg11[%94, %c0_47] : memref<64x32xf32, #tpu.memory_space<vmem>>, vector<8x32xf32>
    %cst_48 = arith.constant dense<0.000000e+00> : vector<8x32xf32>
    %96 = tpu.matmul %85, %10, %cst_48 {dimension_numbers = #tpu.dot_dimension_numbers<[1], [0], [0], [1], [0, 0, 1, 1], [], []>} : vector<8x32xf32>, vector<32x32xf32>, vector<8x32xf32> -> vector<8x32xf32>
    %97 = arith.addf %95, %96 : vector<8x32xf32>
    %98 = math.tanh %97 : vector<8x32xf32>
    %cst_49 = arith.constant dense<0.000000e+00> : vector<8x32xf32>
    %99 = tpu.matmul %98, %11, %cst_49 {dimension_numbers = #tpu.dot_dimension_numbers<[1], [0], [0], [1], [0, 0, 1, 1], [], []>} : vector<8x32xf32>, vector<32x32xf32>, vector<8x32xf32> -> vector<8x32xf32>
    %100 = vector.broadcast %12 : vector<1x32xf32> to vector<8x32xf32>
    %101 = arith.addf %99, %100 : vector<8x32xf32>
    %102 = math.tanh %101 : vector<8x32xf32>
    %103 = arith.index_cast %93 : i32 to index
    %c0_50 = arith.constant 0 : index
    %104 = vector.load %arg8[%103, %c0_50] : memref<64x32xf32, #tpu.memory_space<vmem>>, vector<8x32xf32>
    tpu.vector_store %arg8[%103, %c0_50], %102 {strides = array<i32>} : memref<64x32xf32, #tpu.memory_space<vmem>>, vector<8x32xf32>,
    %c7_i32 = arith.constant 7 : i32
    %c8_i32_51 = arith.constant 8 : i32
    %105 = arith.muli %c7_i32, %c8_i32_51 : i32
    %106 = tpu.assume_multiple %105, 8 : i32
    %107 = arith.index_cast %106 : i32 to index
    %c0_52 = arith.constant 0 : index
    %108 = vector.load %arg11[%107, %c0_52] : memref<64x32xf32, #tpu.memory_space<vmem>>, vector<8x32xf32>
    %cst_53 = arith.constant dense<0.000000e+00> : vector<8x32xf32>
    %109 = tpu.matmul %98, %10, %cst_53 {dimension_numbers = #tpu.dot_dimension_numbers<[1], [0], [0], [1], [0, 0, 1, 1], [], []>} : vector<8x32xf32>, vector<32x32xf32>, vector<8x32xf32> -> vector<8x32xf32>
    %110 = arith.addf %108, %109 : vector<8x32xf32>
    %111 = math.tanh %110 : vector<8x32xf32>
    %cst_54 = arith.constant dense<0.000000e+00> : vector<8x32xf32>
    %112 = tpu.matmul %111, %11, %cst_54 {dimension_numbers = #tpu.dot_dimension_numbers<[1], [0], [0], [1], [0, 0, 1, 1], [], []>} : vector<8x32xf32>, vector<32x32xf32>, vector<8x32xf32> -> vector<8x32xf32>
    %113 = vector.broadcast %12 : vector<1x32xf32> to vector<8x32xf32>
    %114 = arith.addf %112, %113 : vector<8x32xf32>
    %115 = math.tanh %114 : vector<8x32xf32>
    %116 = arith.index_cast %106 : i32 to index
    %c0_55 = arith.constant 0 : index
    %117 = vector.load %arg8[%116, %c0_55] : memref<64x32xf32, #tpu.memory_space<vmem>>, vector<8x32xf32>
    tpu.vector_store %arg8[%116, %c0_55], %115 {strides = array<i32>} : memref<64x32xf32, #tpu.memory_space<vmem>>, vector<8x32xf32>,
    %c8_i32_56 = arith.constant 8 : i32
    %c0_57 = arith.constant 0 : index
    %c0_58 = arith.constant 0 : index
    %118 = vector.load %arg10[%c0_57, %c0_58] : memref<8x32xf32, #tpu.memory_space<vmem>>, vector<8x32xf32>
    tpu.vector_store %arg10[%c0_57, %c0_58], %111 {strides = array<i32>} : memref<8x32xf32, #tpu.memory_space<vmem>>, vector<8x32xf32>,
    %c0_59 = arith.constant 0 : index
    %c0_60 = arith.constant 0 : index
    %119 = vector.load %arg9[%c0_59, %c0_60] : memref<8x32xf32, #tpu.memory_space<vmem>>, vector<8x32xf32>
    tpu.vector_store %arg9[%c0_59, %c0_60], %111 {strides = array<i32>} : memref<8x32xf32, #tpu.memory_space<vmem>>, vector<8x32xf32>,
    return
  }
  func.func @transform_0(%arg0: i32, %arg1: i32) -> (i32, i32) {
    %c1_i32 = arith.constant 1 : i32
    %0 = arith.muli %arg0, %c1_i32 : i32
    %1 = arith.addi %0, %arg1 : i32
    %c0_i32 = arith.constant 0 : i32
    %c0_i32_0 = arith.constant 0 : i32
    return %1, %c0_i32 : i32, i32
  }
  func.func @transform_1(%arg0: i32, %arg1: i32) -> (i32, i32) {
    %c0_i32 = arith.constant 0 : i32
    %c0_i32_0 = arith.constant 0 : i32
    return %arg0, %c0_i32 : i32, i32
  }
  func.func @transform_2(%arg0: i32, %arg1: i32) -> (i32, i32) {
    %c0_i32 = arith.constant 0 : i32
    %c0_i32_0 = arith.constant 0 : i32
    %c0_i32_1 = arith.constant 0 : i32
    return %c0_i32, %c0_i32_0 : i32, i32
  }
  func.func @transform_3(%arg0: i32, %arg1: i32) -> (i32, i32) {
    %c0_i32 = arith.constant 0 : i32
    %c0_i32_0 = arith.constant 0 : i32
    %c0_i32_1 = arith.constant 0 : i32
    return %c0_i32, %c0_i32_0 : i32, i32
  }
  func.func @transform_4(%arg0: i32, %arg1: i32) -> (i32, i32) {
    %c0_i32 = arith.constant 0 : i32
    %c0_i32_0 = arith.constant 0 : i32
    %c0_i32_1 = arith.constant 0 : i32
    return %c0_i32, %c0_i32_0 : i32, i32
  }
  func.func @transform_5(%arg0: i32, %arg1: i32) -> (i32, i32) {
    %c0_i32 = arith.constant 0 : i32
    %c0_i32_0 = arith.constant 0 : i32
    %c0_i32_1 = arith.constant 0 : i32
    return %c0_i32, %c0_i32_0 : i32, i32
  }
  func.func @transform_6(%arg0: i32, %arg1: i32) -> (i32, i32) {
    %c1_i32 = arith.constant 1 : i32
    %0 = arith.muli %arg0, %c1_i32 : i32
    %1 = arith.addi %0, %arg1 : i32
    %c0_i32 = arith.constant 0 : i32
    %c0_i32_0 = arith.constant 0 : i32
    return %1, %c0_i32 : i32, i32
  }
  func.func @transform_7(%arg0: i32, %arg1: i32) -> (i32, i32) {
    %c0_i32 = arith.constant 0 : i32
    %c0_i32_0 = arith.constant 0 : i32
    return %arg0, %c0_i32 : i32, i32
  }
}

</mosaic_0001>

<llo_original>
// kernel: tpu_custom_call.1
$region0: #{tpu_custom_call.1}
  #allocation0 [shape = 'u32[]', space=smem, size = 0x4, offset = 0x4, fixed_abs, tag = 'smem constant byte address 0x4 - core index']
  #allocation1 [shape = 'u32[72,128]{1,0:T(1,128)}', space=vmem, size = 0x9000, scoped, tag = 'internal scratch']
  #allocation2 [shape = 'f32[8,32]{1,0:T(8,128)}', space=vmem, size = 0x1000, scoped, tag = 'scratch operand']
  #allocation3 [shape = 'f32[64,32]{1,0:T(8,128)}', space=vmem, size = 0x8000, scoped, tag = 'scratch operand']
  %s0 = inlined_call_operand.vmem [shape: f32[64,32], index: 0, kind: input, shape index: {}]
  %s1 = inlined_call_operand.vmem [shape: f32[8,32], index: 1, kind: input, shape index: {}]
  %s2 = inlined_call_operand.vmem [shape: f32[32,32], index: 2, kind: input, shape index: {}]
  %s3 = inlined_call_operand.vmem [shape: f32[32,32], index: 3, kind: input, shape index: {}]
  %s4 = inlined_call_operand.vmem [shape: f32[1,32], index: 4, kind: input, shape index: {}]
  %s5 = inlined_call_operand.vmem [shape: f32[1,32], index: 5, kind: input, shape index: {}]
  %s6 = inlined_call_operand.vmem [shape: f32[64,32], index: 6, kind: output, shape index: {0}]
  %s7 = inlined_call_operand.hbm [shape: f32[8,32], index: 7, kind: output, shape index: {1}]
  %8 = xla_tuple %s6, %s7
  %s9 = sld [smem:[#allocation0]]
  $region46: #{tpu_custom_call.1} parent=0
    _
  %s11 = ssub.s32 1, %s9
  %s12 = scalar_select 0, %s11, %s9
  $region1: #{tpu_custom_call.1} parent=0
    #allocation4 [shape = 'u8[4096]{0}', space=vmem, size = 0x1000, scoped, tag = 'output window, operand 1, single buffered']
    #allocation5 [shape = 's32[1]{0}', space=sflag, size = 0x4, scoped, tag = 'scoped memory for tpu_custom_call.1']
    %13 = vsyncpa [#allocation5], 0
    // Predicated region
    $region2: #{tpu_custom_call.1} parent=1 // pred_check
      _
    $region3: #{tpu_custom_call.1} parent=1 // pred_check_branch
      %15 = sbr.rel (0) target = $region5
    $region4: #{tpu_custom_call.1} parent=1 // pred_region
      %s16 = sadd.s32 0, 0
      %s17 = smul.u32 8, %s16
      %p18 = scmp.lt.s32.totalorder %s17, 7
      %s19 = scalar_select %p18, %s17, 7
      %s20 = smul.addr %s19, 8
      %s21 = scalar_lea.vmem %s0, %s20
      %s22 = sadd.s32 0, 0
      %s23 = smul.u32 8, %s22
    $region5: #{tpu_custom_call.1} parent=1 // pred_fallthru
      _
    // Predicated region
    $region6: #{tpu_custom_call.1} parent=1 // pred_check
      _
    $region7: #{tpu_custom_call.1} parent=1 // pred_check_branch
      %25 = sbr.rel (0) target = $region9
    $region8: #{tpu_custom_call.1} parent=1 // pred_region
      _
    $region9: #{tpu_custom_call.1} parent=1 // pred_fallthru
      _
    // Predicated region
    $region10: #{tpu_custom_call.1} parent=1 // pred_check
      _
    $region11: #{tpu_custom_call.1} parent=1 // pred_check_branch
      %27 = sbr.rel (0) target = $region13
    $region12: #{tpu_custom_call.1} parent=1 // pred_region
      _
    $region13: #{tpu_custom_call.1} parent=1 // pred_fallthru
      _
    // Predicated region
    $region14: #{tpu_custom_call.1} parent=1 // pred_check
      _
    $region15: #{tpu_custom_call.1} parent=1 // pred_check_branch
      %29 = sbr.rel (0) target = $region17
    $region16: #{tpu_custom_call.1} parent=1 // pred_region
      _
    $region17: #{tpu_custom_call.1} parent=1 // pred_fallthru
      _
    // Predicated region
    $region18: #{tpu_custom_call.1} parent=1 // pred_check
      _
    $region19: #{tpu_custom_call.1} parent=1 // pred_check_branch
      %31 = sbr.rel (0) target = $region21
    $region20: #{tpu_custom_call.1} parent=1 // pred_region
      _
    $region21: #{tpu_custom_call.1} parent=1 // pred_fallthru
      _
    // Predicated region
    $region22: #{tpu_custom_call.1} parent=1 // pred_check
      _
    $region23: #{tpu_custom_call.1} parent=1 // pred_check_branch
      %33 = sbr.rel (0) target = $region25
    $region24: #{tpu_custom_call.1} parent=1 // pred_region
      _
    $region25: #{tpu_custom_call.1} parent=1 // pred_fallthru
      _
    %s34 = sadd.s32 0, 0
    %s35 = smul.u32 8, %s34
    %p36 = scmp.lt.s32.totalorder %s35, 7
    %s37 = scalar_select %p36, %s35, 7
    %s38 = smul.addr %s37, 8
    %s39 = scalar_lea.vmem %s0, %s38
    %s40 = sadd.s32 0, 0
    %s41 = smul.u32 8, %s40
    %p42 = scmp.lt.s32.totalorder %s41, 7
    %s43 = scalar_select %p42, %s41, 7
    %s44 = smul.addr %s43, 8
    %s45 = scalar_lea.vmem %s6, %s44
    %s46 = sadd.s32 0, 0
    %s47 = smul.u32 8, %s46
    %p48 = scmp.lt.s32.totalorder %s47, 7
    %s49 = scalar_select %p48, %s47, 7
    %s50 = smul.addr %s49, 8
    %s51 = scalar_lea.vmem %s0, %s50
    %s52 = sadd.s32 0, 0
    %s53 = smul.u32 8, %s52
    %s54 = sadd.s32 0, 0
    %s55 = smul.u32 8, %s54
    %p56 = scmp.lt.s32.totalorder %s55, 7
    %s57 = scalar_select %p56, %s55, 7
    %s58 = smul.addr %s57, 8
    %s59 = scalar_lea.vmem %s6, %s58
    %s60 = sadd.s32 0, 0
    %s61 = smul.u32 8, %s60
    %p62 = scmp.eq.s32.totalorder 0, 0
    // Predicated region
    $region26: #{tpu_custom_call.1} parent=1 // pred_check
      %p63 = pneg %p62
    $region27: #{tpu_custom_call.1} parent=1 // pred_check_branch
      %65 = sbr.rel (%p63) target = $region29
    $region28: #{tpu_custom_call.1} parent=1 // pred_region
      %v66 = vld [vmem:[%s1] sm:$0xff]
      %vm67 = vcmask 261120
      %68 = vst.msk [vmem:[#allocation2] sm:$0xff] %vm67, %v66
    $region29: #{tpu_custom_call.1} parent=1 // pred_fallthru
      _
    %v69 = vld [vmem:[%s51] sm:$0xff]
    %v70 = vld [vmem:[%s51 + $0x8] sm:$0xff]
    %v71 = vld [vmem:[%s51 + $0x10] sm:$0xff]
    %v72 = vld [vmem:[%s51 + $0x18] sm:$0xff]
    %v73 = vld [vmem:[%s51 + $0x20] sm:$0xff]
    %v74 = vld [vmem:[%s51 + $0x28] sm:$0xff]
    %v75 = vld [vmem:[%s51 + $0x30] sm:$0xff]
    %v76 = vld [vmem:[%s51 + $0x38] sm:$0xff]
    %v77 = vld [vmem:[%s2] sm:$0xff]
    %v78 = vld [vmem:[%s2 + $0x8] sm:$0xff]
    %v79 = vld [vmem:[%s2 + $0x10] sm:$0xff]
    %v80 = vld [vmem:[%s2 + $0x18] sm:$0xff]
    %v81 = vld [vmem:[%s4] sm:$0x1]
    %v83 = vperm.slane %v81, 0
    %vm85 = vcmask 261120
    %v87 = vsel %vm85, %v69, 0
    %v90 = vsel %vm85, %v70, 0
    %v93 = vsel %vm85, %v71, 0
    %v96 = vsel %vm85, %v72, 0
    %v99 = vsel %vm85, %v73, 0
    %v102 = vsel %vm85, %v74, 0
    %v105 = vsel %vm85, %v75, 0
    %v108 = vsel %vm85, %v76, 0
    %110 = vmatpush.msra.mxu0 0.0
    %111 = vmatpush.msra.mxu0 0.0
    %112 = vmatpush.msra.mxu0 0.0
    %113 = vmatpush.msra.mxu0 0.0
    %114 = vmatpush.msra.mxu0 0.0
    %115 = vmatpush.msra.mxu0 0.0
    %116 = vmatpush.msra.mxu0 0.0
    %117 = vmatpush.msra.mxu0 0.0
    %118 = vmatpush.msra.mxu0 0.0
    %119 = vmatpush.msra.mxu0 0.0
    %120 = vmatpush.msra.mxu0 0.0
    %121 = vmatpush.msra.mxu0 0.0
    %122 = vmatpush.msra.mxu0 %v80
    %123 = vmatpush.msra.mxu0 %v79
    %124 = vmatpush.msra.mxu0 %v78
    %125 = vmatpush.msra.mxu0 %v77
    %126 = vmatmul.f32.gmra.mxu0 %v87
    %v127 = vpop.f32.mrf.mxu0
    %v128 = vadd.f32 %v83, %v127
    %129 = vmatmul.f32.gmra.mxu0 %v90
    %v130 = vpop.f32.mrf.mxu0
    %v131 = vadd.f32 %v83, %v130
    %132 = vmatmul.f32.gmra.mxu0 %v93
    %v133 = vpop.f32.mrf.mxu0
    %v134 = vadd.f32 %v83, %v133
    %135 = vmatmul.f32.gmra.mxu0 %v96
    %v136 = vpop.f32.mrf.mxu0
    %v137 = vadd.f32 %v83, %v136
    %138 = vmatmul.f32.gmra.mxu0 %v99
    %v139 = vpop.f32.mrf.mxu0
    %v140 = vadd.f32 %v83, %v139
    %141 = vmatmul.f32.gmra.mxu0 %v102
    %v142 = vpop.f32.mrf.mxu0
    %v143 = vadd.f32 %v83, %v142
    %144 = vmatmul.f32.gmra.mxu0 %v105
    %v145 = vpop.f32.mrf.mxu0
    %v146 = vadd.f32 %v83, %v145
    %147 = vmatmul.f32.gmra.mxu0 %v108
    %v148 = vpop.f32.mrf.mxu0
    %v149 = vadd.f32 %v83, %v148
    %150 = vdwg.mxu0
    %151 = vst.msk [vmem:[#allocation3] sm:$0xff] %vm85, %v128
    %152 = vst.msk [vmem:[#allocation3 + $0x8] sm:$0xff] %vm85, %v131
    %153 = vst.msk [vmem:[#allocation3 + $0x10] sm:$0xff] %vm85, %v134
    %154 = vst.msk [vmem:[#allocation3 + $0x18] sm:$0xff] %vm85, %v137
    %155 = vst.msk [vmem:[#allocation3 + $0x20] sm:$0xff] %vm85, %v140
    %156 = vst.msk [vmem:[#allocation3 + $0x28] sm:$0xff] %vm85, %v143
    %157 = vst.msk [vmem:[#allocation3 + $0x30] sm:$0xff] %vm85, %v146
    %158 = vst.msk [vmem:[#allocation3 + $0x38] sm:$0xff] %vm85, %v149
    %v159 = vld [vmem:[%s3] sm:$0xff]
    %v160 = vld [vmem:[%s3 + $0x8] sm:$0xff]
    %v161 = vld [vmem:[%s3 + $0x10] sm:$0xff]
    %v162 = vld [vmem:[%s3 + $0x18] sm:$0xff]
    %v163 = vld [vmem:[%s2] sm:$0xff]
    %v164 = vld [vmem:[%s2 + $0x8] sm:$0xff]
    %v165 = vld [vmem:[%s2 + $0x10] sm:$0xff]
    %v166 = vld [vmem:[%s2 + $0x18] sm:$0xff]
    %v167 = vld [vmem:[%s5] sm:$0x1]
    %v168 = vld [vmem:[#allocation2] sm:$0xff]
    %v169 = vld [vmem:[#allocation3] sm:$0xff]
    %v171 = vsel %vm85, %v168, 0
    %173 = vmatpush.msra.mxu0 0.0
    %174 = vmatpush.msra.mxu0 0.0
    %175 = vmatpush.msra.mxu0 0.0
    %176 = vmatpush.msra.mxu0 0.0
    %177 = vmatpush.msra.mxu0 0.0
    %178 = vmatpush.msra.mxu0 0.0
    %179 = vmatpush.msra.mxu0 0.0
    %180 = vmatpush.msra.mxu0 0.0
    %181 = vmatpush.msra.mxu0 0.0
    %182 = vmatpush.msra.mxu0 0.0
    %183 = vmatpush.msra.mxu0 0.0
    %184 = vmatpush.msra.mxu0 0.0
    %185 = vmatpush.msra.mxu0 %v162
    %186 = vmatpush.msra.mxu0 %v161
    %187 = vmatpush.msra.mxu0 %v160
    %188 = vmatpush.msra.mxu0 %v159
    %189 = vmatmul.f32.gmra.mxu0 %v171
    %v190 = vpop.f32.mrf.mxu0
    %v191 = vadd.f32 0.0, %v190
    %192 = vdwg.mxu0
    %v193 = vadd.f32 %v169, %v191
    %v194 = vtanh.pop %v193
    %v196 = vperm.slane %v167, 0
    %v199 = vsel %vm85, %v194, 0
    %201 = vmatpush.msra.mxu0 0.0
    %202 = vmatpush.msra.mxu0 0.0
    %203 = vmatpush.msra.mxu0 0.0
    %204 = vmatpush.msra.mxu0 0.0
    %205 = vmatpush.msra.mxu0 0.0
    %206 = vmatpush.msra.mxu0 0.0
    %207 = vmatpush.msra.mxu0 0.0
    %208 = vmatpush.msra.mxu0 0.0
    %209 = vmatpush.msra.mxu0 0.0
    %210 = vmatpush.msra.mxu0 0.0
    %211 = vmatpush.msra.mxu0 0.0
    %212 = vmatpush.msra.mxu0 0.0
    %213 = vmatpush.msra.mxu0 %v166
    %214 = vmatpush.msra.mxu0 %v165
    %215 = vmatpush.msra.mxu0 %v164
    %216 = vmatpush.msra.mxu0 %v163
    %217 = vmatmul.f32.gmra.mxu0 %v199
    %v218 = vpop.f32.mrf.mxu0
    %v219 = vadd.f32 %v196, %v218
    %220 = vdwg.mxu0
    %v221 = vtanh.pop %v219
    %222 = vst.msk [vmem:[%s59] sm:$0xff] %vm85, %v221
    %s223 = scalar_lea.vmem [#allocation3], 8
    %v224 = vld [vmem:[%s223] sm:$0xff]
    %225 = vmatpush.msra.mxu0 0.0
    %226 = vmatpush.msra.mxu0 0.0
    %227 = vmatpush.msra.mxu0 0.0
    %228 = vmatpush.msra.mxu0 0.0
    %229 = vmatpush.msra.mxu0 0.0
    %230 = vmatpush.msra.mxu0 0.0
    %231 = vmatpush.msra.mxu0 0.0
    %232 = vmatpush.msra.mxu0 0.0
    %233 = vmatpush.msra.mxu0 0.0
    %234 = vmatpush.msra.mxu0 0.0
    %235 = vmatpush.msra.mxu0 0.0
    %236 = vmatpush.msra.mxu0 0.0
    %237 = vmatpush.msra.mxu0 %v162
    %238 = vmatpush.msra.mxu0 %v161
    %239 = vmatpush.msra.mxu0 %v160
    %240 = vmatpush.msra.mxu0 %v159
    %241 = vmatmul.f32.gmra.mxu0 %v199
    %v242 = vpop.f32.mrf.mxu0
    %v243 = vadd.f32 0.0, %v242
    %244 = vdwg.mxu0
    %v245 = vadd.f32 %v224, %v243
    %v246 = vtanh.pop %v245
    %v248 = vsel %vm85, %v246, 0
    %250 = vmatpush.msra.mxu0 0.0
    %251 = vmatpush.msra.mxu0 0.0
    %252 = vmatpush.msra.mxu0 0.0
    %253 = vmatpush.msra.mxu0 0.0
    %254 = vmatpush.msra.mxu0 0.0
    %255 = vmatpush.msra.mxu0 0.0
    %256 = vmatpush.msra.mxu0 0.0
    %257 = vmatpush.msra.mxu0 0.0
    %258 = vmatpush.msra.mxu0 0.0
    %259 = vmatpush.msra.mxu0 0.0
    %260 = vmatpush.msra.mxu0 0.0
    %261 = vmatpush.msra.mxu0 0.0
    %262 = vmatpush.msra.mxu0 %v166
    %263 = vmatpush.msra.mxu0 %v165
    %264 = vmatpush.msra.mxu0 %v164
    %265 = vmatpush.msra.mxu0 %v163
    %266 = vmatmul.f32.gmra.mxu0 %v248
    %v267 = vpop.f32.mrf.mxu0
    %v268 = vadd.f32 %v196, %v267
    %269 = vdwg.mxu0
    %v270 = vtanh.pop %v268
    %s271 = scalar_lea.vmem %s59, 8
    %272 = vst.msk [vmem:[%s271] sm:$0xff] %vm85, %v270
    %s273 = scalar_lea.vmem [#allocation3], 16
    %v274 = vld [vmem:[%s273] sm:$0xff]
    %275 = vmatpush.msra.mxu0 0.0
    %276 = vmatpush.msra.mxu0 0.0
    %277 = vmatpush.msra.mxu0 0.0
    %278 = vmatpush.msra.mxu0 0.0
    %279 = vmatpush.msra.mxu0 0.0
    %280 = vmatpush.msra.mxu0 0.0
    %281 = vmatpush.msra.mxu0 0.0
    %282 = vmatpush.msra.mxu0 0.0
    %283 = vmatpush.msra.mxu0 0.0
    %284 = vmatpush.msra.mxu0 0.0
    %285 = vmatpush.msra.mxu0 0.0
    %286 = vmatpush.msra.mxu0 0.0
    %287 = vmatpush.msra.mxu0 %v162
    %288 = vmatpush.msra.mxu0 %v161
    %289 = vmatpush.msra.mxu0 %v160
    %290 = vmatpush.msra.mxu0 %v159
    %291 = vmatmul.f32.gmra.mxu0 %v248
    %v292 = vpop.f32.mrf.mxu0
    %v293 = vadd.f32 0.0, %v292
    %294 = vdwg.mxu0
    %v295 = vadd.f32 %v274, %v293
    %v296 = vtanh.pop %v295
    %v298 = vsel %vm85, %v296, 0
    %300 = vmatpush.msra.mxu0 0.0
    %301 = vmatpush.msra.mxu0 0.0
    %302 = vmatpush.msra.mxu0 0.0
    %303 = vmatpush.msra.mxu0 0.0
    %304 = vmatpush.msra.mxu0 0.0
    %305 = vmatpush.msra.mxu0 0.0
    %306 = vmatpush.msra.mxu0 0.0
    %307 = vmatpush.msra.mxu0 0.0
    %308 = vmatpush.msra.mxu0 0.0
    %309 = vmatpush.msra.mxu0 0.0
    %310 = vmatpush.msra.mxu0 0.0
    %311 = vmatpush.msra.mxu0 0.0
    %312 = vmatpush.msra.mxu0 %v166
    %313 = vmatpush.msra.mxu0 %v165
    %314 = vmatpush.msra.mxu0 %v164
    %315 = vmatpush.msra.mxu0 %v163
    %316 = vmatmul.f32.gmra.mxu0 %v298
    %v317 = vpop.f32.mrf.mxu0
    %v318 = vadd.f32 %v196, %v317
    %319 = vdwg.mxu0
    %v320 = vtanh.pop %v318
    %s321 = scalar_lea.vmem %s59, 16
    %322 = vst.msk [vmem:[%s321] sm:$0xff] %vm85, %v320
    %s323 = scalar_lea.vmem [#allocation3], 24
    %v324 = vld [vmem:[%s323] sm:$0xff]
    %325 = vmatpush.msra.mxu0 0.0
    %326 = vmatpush.msra.mxu0 0.0
    %327 = vmatpush.msra.mxu0 0.0
    %328 = vmatpush.msra.mxu0 0.0
    %329 = vmatpush.msra.mxu0 0.0
    %330 = vmatpush.msra.mxu0 0.0
    %331 = vmatpush.msra.mxu0 0.0
    %332 = vmatpush.msra.mxu0 0.0
    %333 = vmatpush.msra.mxu0 0.0
    %334 = vmatpush.msra.mxu0 0.0
    %335 = vmatpush.msra.mxu0 0.0
    %336 = vmatpush.msra.mxu0 0.0
    %337 = vmatpush.msra.mxu0 %v162
    %338 = vmatpush.msra.mxu0 %v161
    %339 = vmatpush.msra.mxu0 %v160
    %340 = vmatpush.msra.mxu0 %v159
    %341 = vmatmul.f32.gmra.mxu0 %v298
    %v342 = vpop.f32.mrf.mxu0
    %v343 = vadd.f32 0.0, %v342
    %344 = vdwg.mxu0
    %v345 = vadd.f32 %v324, %v343
    %v346 = vtanh.pop %v345
    %v348 = vsel %vm85, %v346, 0
    %350 = vmatpush.msra.mxu0 0.0
    %351 = vmatpush.msra.mxu0 0.0
    %352 = vmatpush.msra.mxu0 0.0
    %353 = vmatpush.msra.mxu0 0.0
    %354 = vmatpush.msra.mxu0 0.0
    %355 = vmatpush.msra.mxu0 0.0
    %356 = vmatpush.msra.mxu0 0.0
    %357 = vmatpush.msra.mxu0 0.0
    %358 = vmatpush.msra.mxu0 0.0
    %359 = vmatpush.msra.mxu0 0.0
    %360 = vmatpush.msra.mxu0 0.0
    %361 = vmatpush.msra.mxu0 0.0
    %362 = vmatpush.msra.mxu0 %v166
    %363 = vmatpush.msra.mxu0 %v165
    %364 = vmatpush.msra.mxu0 %v164
    %365 = vmatpush.msra.mxu0 %v163
    %366 = vmatmul.f32.gmra.mxu0 %v348
    %v367 = vpop.f32.mrf.mxu0
    %v368 = vadd.f32 %v196, %v367
    %369 = vdwg.mxu0
    %v370 = vtanh.pop %v368
    %s371 = scalar_lea.vmem %s59, 24
    %372 = vst.msk [vmem:[%s371] sm:$0xff] %vm85, %v370
    %s373 = scalar_lea.vmem [#allocation3], 32
    %v374 = vld [vmem:[%s373] sm:$0xff]
    %375 = vmatpush.msra.mxu0 0.0
    %376 = vmatpush.msra.mxu0 0.0
    %377 = vmatpush.msra.mxu0 0.0
    %378 = vmatpush.msra.mxu0 0.0
    %379 = vmatpush.msra.mxu0 0.0
    %380 = vmatpush.msra.mxu0 0.0
    %381 = vmatpush.msra.mxu0 0.0
    %382 = vmatpush.msra.mxu0 0.0
    %383 = vmatpush.msra.mxu0 0.0
    %384 = vmatpush.msra.mxu0 0.0
    %385 = vmatpush.msra.mxu0 0.0
    %386 = vmatpush.msra.mxu0 0.0
    %387 = vmatpush.msra.mxu0 %v162
    %388 = vmatpush.msra.mxu0 %v161
    %389 = vmatpush.msra.mxu0 %v160
    %390 = vmatpush.msra.mxu0 %v159
    %391 = vmatmul.f32.gmra.mxu0 %v348
    %v392 = vpop.f32.mrf.mxu0
    %v393 = vadd.f32 0.0, %v392
    %394 = vdwg.mxu0
    %v395 = vadd.f32 %v374, %v393
    %v396 = vtanh.pop %v395
    %v398 = vsel %vm85, %v396, 0
    %400 = vmatpush.msra.mxu0 0.0
    %401 = vmatpush.msra.mxu0 0.0
    %402 = vmatpush.msra.mxu0 0.0
    %403 = vmatpush.msra.mxu0 0.0
    %404 = vmatpush.msra.mxu0 0.0
    %405 = vmatpush.msra.mxu0 0.0
    %406 = vmatpush.msra.mxu0 0.0
    %407 = vmatpush.msra.mxu0 0.0
    %408 = vmatpush.msra.mxu0 0.0
    %409 = vmatpush.msra.mxu0 0.0
    %410 = vmatpush.msra.mxu0 0.0
    %411 = vmatpush.msra.mxu0 0.0
    %412 = vmatpush.msra.mxu0 %v166
    %413 = vmatpush.msra.mxu0 %v165
    %414 = vmatpush.msra.mxu0 %v164
    %415 = vmatpush.msra.mxu0 %v163
    %416 = vmatmul.f32.gmra.mxu0 %v398
    %v417 = vpop.f32.mrf.mxu0
    %v418 = vadd.f32 %v196, %v417
    %419 = vdwg.mxu0
    %v420 = vtanh.pop %v418
    %s421 = scalar_lea.vmem %s59, 32
    %422 = vst.msk [vmem:[%s421] sm:$0xff] %vm85, %v420
    %s423 = scalar_lea.vmem [#allocation3], 40
    %v424 = vld [vmem:[%s423] sm:$0xff]
    %425 = vmatpush.msra.mxu0 0.0
    %426 = vmatpush.msra.mxu0 0.0
    %427 = vmatpush.msra.mxu0 0.0
    %428 = vmatpush.msra.mxu0 0.0
    %429 = vmatpush.msra.mxu0 0.0
    %430 = vmatpush.msra.mxu0 0.0
    %431 = vmatpush.msra.mxu0 0.0
    %432 = vmatpush.msra.mxu0 0.0
    %433 = vmatpush.msra.mxu0 0.0
    %434 = vmatpush.msra.mxu0 0.0
    %435 = vmatpush.msra.mxu0 0.0
    %436 = vmatpush.msra.mxu0 0.0
    %437 = vmatpush.msra.mxu0 %v162
    %438 = vmatpush.msra.mxu0 %v161
    %439 = vmatpush.msra.mxu0 %v160
    %440 = vmatpush.msra.mxu0 %v159
    %441 = vmatmul.f32.gmra.mxu0 %v398
    %v442 = vpop.f32.mrf.mxu0
    %v443 = vadd.f32 0.0, %v442
    %444 = vdwg.mxu0
    %v445 = vadd.f32 %v424, %v443
    %v446 = vtanh.pop %v445
    %v448 = vsel %vm85, %v446, 0
    %450 = vmatpush.msra.mxu0 0.0
    %451 = vmatpush.msra.mxu0 0.0
    %452 = vmatpush.msra.mxu0 0.0
    %453 = vmatpush.msra.mxu0 0.0
    %454 = vmatpush.msra.mxu0 0.0
    %455 = vmatpush.msra.mxu0 0.0
    %456 = vmatpush.msra.mxu0 0.0
    %457 = vmatpush.msra.mxu0 0.0
    %458 = vmatpush.msra.mxu0 0.0
    %459 = vmatpush.msra.mxu0 0.0
    %460 = vmatpush.msra.mxu0 0.0
    %461 = vmatpush.msra.mxu0 0.0
    %462 = vmatpush.msra.mxu0 %v166
    %463 = vmatpush.msra.mxu0 %v165
    %464 = vmatpush.msra.mxu0 %v164
    %465 = vmatpush.msra.mxu0 %v163
    %466 = vmatmul.f32.gmra.mxu0 %v448
    %v467 = vpop.f32.mrf.mxu0
    %v468 = vadd.f32 %v196, %v467
    %469 = vdwg.mxu0
    %v470 = vtanh.pop %v468
    %s471 = scalar_lea.vmem %s59, 40
    %472 = vst.msk [vmem:[%s471] sm:$0xff] %vm85, %v470
    %s473 = scalar_lea.vmem [#allocation3], 48
    %v474 = vld [vmem:[%s473] sm:$0xff]
    %475 = vmatpush.msra.mxu0 0.0
    %476 = vmatpush.msra.mxu0 0.0
    %477 = vmatpush.msra.mxu0 0.0
    %478 = vmatpush.msra.mxu0 0.0
    %479 = vmatpush.msra.mxu0 0.0
    %480 = vmatpush.msra.mxu0 0.0
    %481 = vmatpush.msra.mxu0 0.0
    %482 = vmatpush.msra.mxu0 0.0
    %483 = vmatpush.msra.mxu0 0.0
    %484 = vmatpush.msra.mxu0 0.0
    %485 = vmatpush.msra.mxu0 0.0
    %486 = vmatpush.msra.mxu0 0.0
    %487 = vmatpush.msra.mxu0 %v162
    %488 = vmatpush.msra.mxu0 %v161
    %489 = vmatpush.msra.mxu0 %v160
    %490 = vmatpush.msra.mxu0 %v159
    %491 = vmatmul.f32.gmra.mxu0 %v448
    %v492 = vpop.f32.mrf.mxu0
    %v493 = vadd.f32 0.0, %v492
    %494 = vdwg.mxu0
    %v495 = vadd.f32 %v474, %v493
    %v496 = vtanh.pop %v495
    %v498 = vsel %vm85, %v496, 0
    %500 = vmatpush.msra.mxu0 0.0
    %501 = vmatpush.msra.mxu0 0.0
    %502 = vmatpush.msra.mxu0 0.0
    %503 = vmatpush.msra.mxu0 0.0
    %504 = vmatpush.msra.mxu0 0.0
    %505 = vmatpush.msra.mxu0 0.0
    %506 = vmatpush.msra.mxu0 0.0
    %507 = vmatpush.msra.mxu0 0.0
    %508 = vmatpush.msra.mxu0 0.0
    %509 = vmatpush.msra.mxu0 0.0
    %510 = vmatpush.msra.mxu0 0.0
    %511 = vmatpush.msra.mxu0 0.0
    %512 = vmatpush.msra.mxu0 %v166
    %513 = vmatpush.msra.mxu0 %v165
    %514 = vmatpush.msra.mxu0 %v164
    %515 = vmatpush.msra.mxu0 %v163
    %516 = vmatmul.f32.gmra.mxu0 %v498
    %v517 = vpop.f32.mrf.mxu0
    %v518 = vadd.f32 %v196, %v517
    %519 = vdwg.mxu0
    %v520 = vtanh.pop %v518
    %s521 = scalar_lea.vmem %s59, 48
    %522 = vst.msk [vmem:[%s521] sm:$0xff] %vm85, %v520
    %s523 = scalar_lea.vmem [#allocation3], 56
    %v524 = vld [vmem:[%s523] sm:$0xff]
    %525 = vmatpush.msra.mxu0 0.0
    %526 = vmatpush.msra.mxu0 0.0
    %527 = vmatpush.msra.mxu0 0.0
    %528 = vmatpush.msra.mxu0 0.0
    %529 = vmatpush.msra.mxu0 0.0
    %530 = vmatpush.msra.mxu0 0.0
    %531 = vmatpush.msra.mxu0 0.0
    %532 = vmatpush.msra.mxu0 0.0
    %533 = vmatpush.msra.mxu0 0.0
    %534 = vmatpush.msra.mxu0 0.0
    %535 = vmatpush.msra.mxu0 0.0
    %536 = vmatpush.msra.mxu0 0.0
    %537 = vmatpush.msra.mxu0 %v162
    %538 = vmatpush.msra.mxu0 %v161
    %539 = vmatpush.msra.mxu0 %v160
    %540 = vmatpush.msra.mxu0 %v159
    %541 = vmatmul.f32.gmra.mxu0 %v498
    %v542 = vpop.f32.mrf.mxu0
    %v543 = vadd.f32 0.0, %v542
    %544 = vdwg.mxu0
    %v545 = vadd.f32 %v524, %v543
    %v546 = vtanh.pop %v545
    %v548 = vsel %vm85, %v546, 0
    %550 = vmatpush.msra.mxu0 0.0
    %551 = vmatpush.msra.mxu0 0.0
    %552 = vmatpush.msra.mxu0 0.0
    %553 = vmatpush.msra.mxu0 0.0
    %554 = vmatpush.msra.mxu0 0.0
    %555 = vmatpush.msra.mxu0 0.0
    %556 = vmatpush.msra.mxu0 0.0
    %557 = vmatpush.msra.mxu0 0.0
    %558 = vmatpush.msra.mxu0 0.0
    %559 = vmatpush.msra.mxu0 0.0
    %560 = vmatpush.msra.mxu0 0.0
    %561 = vmatpush.msra.mxu0 0.0
    %562 = vmatpush.msra.mxu0 %v166
    %563 = vmatpush.msra.mxu0 %v165
    %564 = vmatpush.msra.mxu0 %v164
    %565 = vmatpush.msra.mxu0 %v163
    %566 = vmatmul.f32.gmra.mxu0 %v548
    %v567 = vpop.f32.mrf.mxu0
    %v568 = vadd.f32 %v196, %v567
    %569 = vdwg.mxu0
    %v570 = vtanh.pop %v568
    %s571 = scalar_lea.vmem %s59, 56
    %572 = vst.msk [vmem:[%s571] sm:$0xff] %vm85, %v570
    %573 = vst.msk [vmem:[#allocation2] sm:$0xff] %vm85, %v546
    %574 = vst.msk [vmem:[#allocation4] sm:$0xff] %vm85, %v546
    %s575 = sadd.s32 0, 0
    %s576 = smul.u32 8, %s575
    %p577 = scmp.lt.s32.totalorder %s576, 7
    %s578 = scalar_select %p577, %s576, 7
    %s579 = smul.addr %s578, 8
    %s580 = scalar_lea.vmem %s6, %s579
    // Predicated region
    $region30: #{tpu_custom_call.1} parent=1 // pred_check
      _
    $region31: #{tpu_custom_call.1} parent=1 // pred_check_branch
      %582 = sbr.rel (0) target = $region33
    $region32: #{tpu_custom_call.1} parent=1 // pred_region
      %s583 = sadd.s32 0, 0
      %s584 = smul.u32 8, %s583
    $region33: #{tpu_custom_call.1} parent=1 // pred_fallthru
      _
    // Predicated region
    $region34: #{tpu_custom_call.1} parent=1 // pred_check
      _
    $region35: #{tpu_custom_call.1} parent=1 // pred_check_branch
      %586 = sbr.rel (0) target = $region37
    $region36: #{tpu_custom_call.1} parent=1 // pred_region
      %588 = vsyncadd [#allocation5], 0
      %s590 = sshll.u32 [#allocation4], 4
      %s591 = int_to_ptr.vmem [resolvable:$true] %s590
      %s592 = sshll.u32 %s7, 4
      %s593 = int_to_ptr.hbm [resolvable:$true] %s592
      %595 = dma.vmem_to_hbm [thread:$0]  %s591, 128, %s593, [#allocation5]
    $region37: #{tpu_custom_call.1} parent=1 // pred_fallthru
      _
    // Predicated region
    $region38: #{tpu_custom_call.1} parent=1 // pred_check
      _
    $region39: #{tpu_custom_call.1} parent=1 // pred_check_branch
      %597 = sbr.rel (0) target = $region41
    $region40: #{tpu_custom_call.1} parent=1 // pred_region
      %s598 = sadd.s32 0, 0
      %s599 = smul.u32 8, %s598
      %p600 = scmp.lt.s32.totalorder %s599, 7
      %s601 = scalar_select %p600, %s599, 7
      %s602 = smul.addr %s601, 8
      %s603 = scalar_lea.vmem %s6, %s602
    $region41: #{tpu_custom_call.1} parent=1 // pred_fallthru
      _
    // Predicated region
    $region42: #{tpu_custom_call.1} parent=1 // pred_check
      _
    $region43: #{tpu_custom_call.1} parent=1 // pred_check_branch
      %605 = sbr.rel (0) target = $region45
    $region44: #{tpu_custom_call.1} parent=1 // pred_region
      %607 = dma.done [#allocation5], 128
    $region45: #{tpu_custom_call.1} parent=1 // pred_fallthru
      _
    %608 = vsyncpa [#allocation5], 1

</llo_original>
